<compile_context>
chip_gen: v6e
topology: v6e:2x2x1
jax: 0.10.0
libtpu: 0.0.40
codegen_flags: <defaults>
</compile_context>

<pallas_src>
import functools

import jax
import jax.numpy as jnp
from jax.experimental import pallas as pl
from jax.experimental.pallas import tpu as pltpu

# dot_general dimension numbers for "A @ B^T": contract the last dim of both.
_NT_DIMS = (((1,), (1,)), ((), ()))


def _round_up(x, m):
    return (x + m - 1) // m * m


def css_kernel(probs_ref, feats_ref, out_ref, acc_ref, m_ref, l_ref, *,
               scale, hw, block_hw, masked):
    """One (batch b, channel-block c, spatial-tile t) grid step.

    probs_ref: (K, block_hw)   class logits tile
    feats_ref: (Cb, block_hw)  feature tile (native dtype, fed to the MXU as-is)
    out_ref  : (K, Cb)         class-major context (transposed outside kernel)
    acc_ref  : (K, Cb) f32     running sum_hw exp(..) * feats
    m_ref    : (K, 1)  f32     running per-class max of scale*probs (online softmax)
    l_ref    : (K, 1)  f32     running sum_hw exp(scale*probs - m)
    """
    t = pl.program_id(2)

    @pl.when(t == 0)
    def _init():
        acc_ref[...] = jnp.zeros_like(acc_ref)
        m_ref[...] = jnp.full_like(m_ref, -jnp.inf)
        l_ref[...] = jnp.zeros_like(l_ref)

    # Scaled logits for this spatial tile (softmax math in f32).
    s = scale * probs_ref[...].astype(jnp.float32)            # (K, block_hw)
    if masked:
        # Padded spatial columns get a huge negative logit -> exp == 0, so they
        # contribute to neither the numerator nor the denominator.
        col = t * block_hw + jax.lax.broadcasted_iota(jnp.int32, s.shape, 1)
        s = jnp.where(col < hw, s, jnp.float32(-1e30))

    # Online (streaming) softmax update: all per-class stats are (K, 1) columns
    # so every broadcast is along lanes -- no relayouts.
    m_prev = m_ref[...]
    m_new = jnp.maximum(m_prev, jnp.max(s, axis=-1, keepdims=True))
    alpha = jnp.exp(m_prev - m_new)                           # (K, 1)
    p = jnp.exp(s - m_new)                                    # (K, block_hw)

    m_ref[...] = m_new
    l_ref[...] = alpha * l_ref[...] + jnp.sum(p, axis=-1, keepdims=True)

    # Weighted-sum partial on the MXU: (K, THW) x (Cb, THW)^T -> (K, Cb).
    # Keep feats in its native dtype (bf16 stays bf16); accumulate in f32.
    feats = feats_ref[...]
    partial = jax.lax.dot_general(p.astype(feats.dtype), feats, _NT_DIMS,
                                  preferred_element_type=jnp.float32)
    acc_ref[...] = acc_ref[...] * alpha + partial

    @pl.when(t == pl.num_programs(2) - 1)
    def _finalize():
        out_ref[...] = (acc_ref[...] / l_ref[...]).astype(out_ref.dtype)


def css_forward(feats, probs, scale):
    """feats: (B, C, H, W), probs: (B, K, H, W)  ->  (B, C, K, 1)."""
    B, C, H, W = feats.shape
    Bp, K, Hp, Wp = probs.shape
    assert (B, H, W) == (Bp, Hp, Wp)
    HW = H * W

    # Pure reshapes of contiguous NCHW tensors -- no HBM transpose passes.
    feats2 = feats.reshape(B, C, HW)
    probs2 = probs.reshape(B, K, HW)

    f_bytes = feats2.dtype.itemsize
    p_bytes = probs2.dtype.itemsize

    # v7x has 2 TensorCores: when B alone can't feed both, add a parallel
    # C-split axis (only when it keeps feats/out blocks lane-aligned).
    n_c = 2 if (B == 1 and C % 256 == 0) else 1
    c_blk = C // n_c

    # Generation-aware VMEM budget (64 MiB v7x, 128 MiB v5e/v6e); conservative
    # v7x-safe fallback if the query is unavailable.
    try:
        vmem_cap = int(getattr(pltpu.get_tpu_info(), "vmem_capacity_bytes"))
    except Exception:
        vmem_cap = 64 * 1024 * 1024
    budget = int(vmem_cap * 0.65)            # double-buffered streamed working set

    # Largest lane-aligned spatial tile fitting the budget, then split evenly
    # across the resulting number of grid steps.
    per_col = 2 * (c_blk * f_bytes + K * p_bytes)     # bytes per column (2 bufs)
    hw_lane = _round_up(HW, 128)
    block_hw = min(hw_lane, max((budget // per_col) // 128, 1) * 128)
    n_hw = -(-hw_lane // block_hw)
    block_hw = _round_up(-(-hw_lane // n_hw), 128)
    hw_pad = block_hw * n_hw

    masked = hw_pad != HW
    if masked:
        pad = hw_pad - HW
        feats2 = jnp.pad(feats2, ((0, 0), (0, 0), (0, pad)))   # zeros
        probs2 = jnp.pad(probs2, ((0, 0), (0, 0), (0, pad)))   # value irrelevant (masked)

    # Raise the scoped-VMEM limit so the budgeted tiles are actually usable
    # (16/32 MiB defaults on v5e/v6e would clamp them back), with headroom.
    needed = (2 * block_hw * (c_blk * f_bytes + K * p_bytes)      # streamed tiles
              + 4 * max(K, 8) * (max(c_blk, 128) + 2 * 128)       # f32 scratch (padded est.)
              + 2 * max(K, 8) * max(c_blk, 128) * f_bytes         # output block
              + (4 << 20))                                        # margin
    vmem_limit = int(min(max(needed, 32 << 20), int(vmem_cap * 0.9)))

    kernel = functools.partial(css_kernel, scale=float(scale), hw=HW,
                               block_hw=block_hw, masked=masked)
    # TODO(synk): if `scale` ever becomes a traced/learnable scalar, pass it via
    # an SMEM scalar (scalar prefetch) instead of baking it as a Python constant.

    ctx = pl.pallas_call(
        kernel,
        out_shape=jax.ShapeDtypeStruct((B, K, C), feats.dtype),
        grid=(B, n_c, n_hw),
        in_specs=[
            pl.BlockSpec((None, K, block_hw), lambda b, c, t: (b, 0, t)),
            pl.BlockSpec((None, c_blk, block_hw), lambda b, c, t: (b, c, t)),
        ],
        out_specs=pl.BlockSpec((None, K, c_blk), lambda b, c, t: (b, 0, c)),
        scratch_shapes=[
            pltpu.VMEM((K, c_blk), jnp.float32),   # acc
            pltpu.VMEM((K, 1), jnp.float32),       # running max m
            pltpu.VMEM((K, 1), jnp.float32),       # running denom l
        ],
        compiler_params=pltpu.CompilerParams(
            dimension_semantics=("parallel", "parallel", "arbitrary"),
            vmem_limit_bytes=vmem_limit),
    )(probs2, feats2)

    # Tiny (B, K, C) -> (B, C, K, 1) permute outside the kernel.
    return jnp.transpose(ctx, (0, 2, 1))[..., None]


def css_reference(feats, probs, scale):
    """Pure-JAX replica of the PyTorch CSS.forward for correctness checking."""
    B, C, H, W = feats.shape
    K = probs.shape[1]
    probs2 = probs.reshape(B, K, H * W)
    feats2 = jnp.transpose(feats.reshape(B, C, H * W), (0, 2, 1))   # (B, HW, C)
    p = jax.nn.softmax(scale * probs2, axis=2)
    ctx = jnp.einsum("bkh,bhc->bkc", p, feats2)                     # (B, K, C)
    return jnp.transpose(ctx, (0, 2, 1))[..., None]                 # (B, C, K, 1)


if __name__ == "__main__":
    scale = 2.0
    key = jax.random.PRNGKey(0)

    # Case 1: lane-aligned spatial size (HW % 128 == 0).
    # Case 2: unaligned spatial size exercising the pad + in-kernel-mask path.
    for (B, C, K, H, W) in ((2, 32, 8, 32, 32), (2, 32, 8, 30, 30)):
        key, kf, kp = jax.random.split(key, 3)
        feats = jax.random.normal(kf, (B, C, H, W), jnp.float32)
        probs = jax.random.normal(kp, (B, K, H, W), jnp.float32)

        out = jax.block_until_ready(css_forward(feats, probs, scale))
        ref = css_reference(feats, probs, scale)
        assert out.shape == (B, C, K, 1)
        err = jnp.max(jnp.abs(out - ref))
        assert err < 1e-4, f"Pallas CSS mismatch vs JAX reference: {err}"

    print("KERNEL_OK")
</pallas_src>

<mosaic_0001>
module attributes {stable_mosaic.version = 11 : i64} {
  func.func @css_kernel(%arg0: i32, %arg1: i32, %arg2: i32, %arg3: memref<1x8x1024xf32, #tpu.memory_space<vmem>>, %arg4: memref<1x32x1024xf32, #tpu.memory_space<vmem>>, %arg5: memref<1x8x32xf32, #tpu.memory_space<vmem>>, %arg6: memref<8x32xf32, #tpu.memory_space<vmem>>, %arg7: memref<8x1xf32, #tpu.memory_space<vmem>>, %arg8: memref<8x1xf32, #tpu.memory_space<vmem>>) attributes {dimension_semantics = [#tpu.dimension_semantics<parallel>, #tpu.dimension_semantics<parallel>, #tpu.dimension_semantics<arbitrary>], iteration_bounds = array<i64: 2, 1, 1>, scalar_prefetch = 0 : i64, scratch_operands = 3 : i64, tpu.core_type = #tpu.core_type<tc>, window_params = [{transform_indices = @transform_0, window_bounds = array<i64: 1, 8, 1024>}, {transform_indices = @transform_1, window_bounds = array<i64: 1, 32, 1024>}, {transform_indices = @transform_2, window_bounds = array<i64: 1, 8, 32>}]} {
    %c0_i32 = arith.constant 0 : i32
    %0 = arith.cmpi eq, %arg2, %c0_i32 : i32
    %1 = arith.extui %0 : i1 to i32
    %c0_i32_0 = arith.constant 0 : i32
    %2 = arith.cmpi ne, %1, %c0_i32_0 : i32
    scf.if %2 {
      %cst_23 = arith.constant 0.000000e+00 : f32
      %34 = vector.broadcast %cst_23 : f32 to vector<8x32xf32>
      %c0_24 = arith.constant 0 : index
      %c0_25 = arith.constant 0 : index
      %35 = vector.load %arg6[%c0_24, %c0_25] : memref<8x32xf32, #tpu.memory_space<vmem>>, vector<8x32xf32>
      tpu.vector_store %arg6[%c0_24, %c0_25], %34 {strides = array<i32>} : memref<8x32xf32, #tpu.memory_space<vmem>>, vector<8x32xf32>,
      %cst_26 = arith.constant 0xFF800000 : f32
      %36 = vector.broadcast %cst_26 : f32 to vector<8x1xf32>
      %c0_27 = arith.constant 0 : index
      %c0_28 = arith.constant 0 : index
      %37 = vector.load %arg7[%c0_27, %c0_28] : memref<8x1xf32, #tpu.memory_space<vmem>>, vector<8x1xf32>
      tpu.vector_store %arg7[%c0_27, %c0_28], %36 {strides = array<i32>} : memref<8x1xf32, #tpu.memory_space<vmem>>, vector<8x1xf32>,
      %cst_29 = arith.constant 0.000000e+00 : f32
      %38 = vector.broadcast %cst_29 : f32 to vector<8x1xf32>
      %c0_30 = arith.constant 0 : index
      %c0_31 = arith.constant 0 : index
      %39 = vector.load %arg8[%c0_30, %c0_31] : memref<8x1xf32, #tpu.memory_space<vmem>>, vector<8x1xf32>
      tpu.vector_store %arg8[%c0_30, %c0_31], %38 {strides = array<i32>} : memref<8x1xf32, #tpu.memory_space<vmem>>, vector<8x1xf32>,
    } else {
    }
    %c0 = arith.constant 0 : index
    %c0_1 = arith.constant 0 : index
    %c0_2 = arith.constant 0 : index
    %3 = vector.load %arg3[%c0, %c0_1, %c0_2] : memref<1x8x1024xf32, #tpu.memory_space<vmem>>, vector<1x8x1024xf32>
    %4 = vector.shape_cast %3 : vector<1x8x1024xf32> to vector<8x1024xf32>
    %cst = arith.constant 2.000000e+00 : f32
    %5 = vector.broadcast %cst : f32 to vector<8x1024xf32>
    %6 = arith.mulf %5, %4 : vector<8x1024xf32>
    %c0_3 = arith.constant 0 : index
    %c0_4 = arith.constant 0 : index
    %7 = vector.load %arg7[%c0_3, %c0_4] : memref<8x1xf32, #tpu.memory_space<vmem>>, vector<8x1xf32>
    %cst_5 = arith.constant dense<0xFF800000> : vector<8xf32>
    %8 = vector.multi_reduction <maximumf>, %6, %cst_5 [1] : vector<8x1024xf32> to vector<8xf32>
    %9 = vector.shape_cast %8 : vector<8xf32> to vector<8x1xf32>
    %10 = arith.maximumf %7, %9 : vector<8x1xf32>
    %11 = arith.subf %7, %10 : vector<8x1xf32>
    %12 = math.exp %11 : vector<8x1xf32>
    %13 = vector.broadcast %10 : vector<8x1xf32> to vector<8x1024xf32>
    %14 = arith.subf %6, %13 : vector<8x1024xf32>
    %15 = math.exp %14 : vector<8x1024xf32>
    %c0_6 = arith.constant 0 : index
    %c0_7 = arith.constant 0 : index
    %16 = vector.load %arg7[%c0_6, %c0_7] : memref<8x1xf32, #tpu.memory_space<vmem>>, vector<8x1xf32>
    tpu.vector_store %arg7[%c0_6, %c0_7], %10 {strides = array<i32>} : memref<8x1xf32, #tpu.memory_space<vmem>>, vector<8x1xf32>,
    %c0_8 = arith.constant 0 : index
    %c0_9 = arith.constant 0 : index
    %17 = vector.load %arg8[%c0_8, %c0_9] : memref<8x1xf32, #tpu.memory_space<vmem>>, vector<8x1xf32>
    %18 = arith.mulf %12, %17 : vector<8x1xf32>
    %cst_10 = arith.constant dense<0.000000e+00> : vector<8xf32>
    %19 = vector.multi_reduction <add>, %15, %cst_10 [1] : vector<8x1024xf32> to vector<8xf32>
    %20 = vector.shape_cast %19 : vector<8xf32> to vector<8x1xf32>
    %21 = arith.addf %18, %20 : vector<8x1xf32>
    %c0_11 = arith.constant 0 : index
    %c0_12 = arith.constant 0 : index
    %22 = vector.load %arg8[%c0_11, %c0_12] : memref<8x1xf32, #tpu.memory_space<vmem>>, vector<8x1xf32>
    tpu.vector_store %arg8[%c0_11, %c0_12], %21 {strides = array<i32>} : memref<8x1xf32, #tpu.memory_space<vmem>>, vector<8x1xf32>,
    %c0_13 = arith.constant 0 : index
    %c0_14 = arith.constant 0 : index
    %c0_15 = arith.constant 0 : index
    %23 = vector.load %arg4[%c0_13, %c0_14, %c0_15] : memref<1x32x1024xf32, #tpu.memory_space<vmem>>, vector<1x32x1024xf32>
    %24 = vector.shape_cast %23 : vector<1x32x1024xf32> to vector<32x1024xf32>
    %cst_16 = arith.constant dense<0.000000e+00> : vector<8x32xf32>
    %25 = tpu.matmul %15, %24, %cst_16 {dimension_numbers = #tpu.dot_dimension_numbers<[1], [1], [0], [0], [0, 0, 1, 0], [], []>} : vector<8x1024xf32>, vector<32x1024xf32>, vector<8x32xf32> -> vector<8x32xf32>
    %c0_17 = arith.constant 0 : index
    %c0_18 = arith.constant 0 : index
    %26 = vector.load %arg6[%c0_17, %c0_18] : memref<8x32xf32, #tpu.memory_space<vmem>>, vector<8x32xf32>
    %27 = vector.broadcast %12 : vector<8x1xf32> to vector<8x32xf32>
    %28 = arith.mulf %26, %27 : vector<8x32xf32>
    %29 = arith.addf %28, %25 : vector<8x32xf32>
    %c0_19 = arith.constant 0 : index
    %c0_20 = arith.constant 0 : index
    %30 = vector.load %arg6[%c0_19, %c0_20] : memref<8x32xf32, #tpu.memory_space<vmem>>, vector<8x32xf32>
    tpu.vector_store %arg6[%c0_19, %c0_20], %29 {strides = array<i32>} : memref<8x32xf32, #tpu.memory_space<vmem>>, vector<8x32xf32>,
    %c0_i32_21 = arith.constant 0 : i32
    %31 = arith.cmpi eq, %arg2, %c0_i32_21 : i32
    %32 = arith.extui %31 : i1 to i32
    %c0_i32_22 = arith.constant 0 : i32
    %33 = arith.cmpi ne, %32, %c0_i32_22 : i32
    scf.if %33 {
      %c0_23 = arith.constant 0 : index
      %c0_24 = arith.constant 0 : index
      %34 = vector.load %arg6[%c0_23, %c0_24] : memref<8x32xf32, #tpu.memory_space<vmem>>, vector<8x32xf32>
      %c0_25 = arith.constant 0 : index
      %c0_26 = arith.constant 0 : index
      %35 = vector.load %arg8[%c0_25, %c0_26] : memref<8x1xf32, #tpu.memory_space<vmem>>, vector<8x1xf32>
      %36 = vector.broadcast %35 : vector<8x1xf32> to vector<8x32xf32>
      %37 = arith.divf %34, %36 : vector<8x32xf32>
      %c0_27 = arith.constant 0 : index
      %c0_28 = arith.constant 0 : index
      %c0_29 = arith.constant 0 : index
      %38 = vector.load %arg5[%c0_27, %c0_28, %c0_29] : memref<1x8x32xf32, #tpu.memory_space<vmem>>, vector<1x8x32xf32>
      %39 = vector.shape_cast %38 : vector<1x8x32xf32> to vector<8x32xf32>
      %40 = vector.shape_cast %37 : vector<8x32xf32> to vector<1x8x32xf32>
      tpu.vector_store %arg5[%c0_27, %c0_28, %c0_29], %40 {strides = array<i32>} : memref<1x8x32xf32, #tpu.memory_space<vmem>>, vector<1x8x32xf32>,
    } else {
    }
    return
  }
  func.func @transform_0(%arg0: i32, %arg1: i32, %arg2: i32) -> (i32, i32, i32) {
    %c0_i32 = arith.constant 0 : i32
    %c0_i32_0 = arith.constant 0 : i32
    return %arg0, %c0_i32, %arg2 : i32, i32, i32
  }
  func.func @transform_1(%arg0: i32, %arg1: i32, %arg2: i32) -> (i32, i32, i32) {
    %c0_i32 = arith.constant 0 : i32
    return %arg0, %arg1, %arg2 : i32, i32, i32
  }
  func.func @transform_2(%arg0: i32, %arg1: i32, %arg2: i32) -> (i32, i32, i32) {
    %c0_i32 = arith.constant 0 : i32
    %c0_i32_0 = arith.constant 0 : i32
    return %arg0, %c0_i32, %arg1 : i32, i32, i32
  }
}

</mosaic_0001>

<llo_original>
// kernel: tpu_custom_call.1
$region0: #{tpu_custom_call.1}
  #allocation0 [shape = 'u32[]', space=smem, size = 0x4, offset = 0x4, fixed_abs, tag = 'smem constant byte address 0x4 - core index']
  #allocation1 [shape = 'u32[144,128]{1,0:T(1,128)}', space=vmem, size = 0x12000, scoped, tag = 'internal scratch']
  #allocation2 [shape = 'f32[8,32]{1,0:T(8,128)}', space=vmem, size = 0x1000, scoped, tag = 'scratch operand']
  #allocation3 [shape = 'f32[8,1]{1,0:T(8,128)}', space=vmem, size = 0x1000, scoped, tag = 'scratch operand']
  #allocation4 [shape = 'f32[8,1]{1,0:T(8,128)}', space=vmem, size = 0x1000, scoped, tag = 'scratch operand']
  %s0 = inlined_call_operand.hbm [shape: f32[2,8,1024], index: 0, kind: input, shape index: {}]
  %s1 = inlined_call_operand.hbm [shape: f32[2,32,1024], index: 1, kind: input, shape index: {}]
  %s2 = inlined_call_operand.hbm [shape: f32[2,8,32], index: 2, kind: output, shape index: {}]
  %s3 = sld [smem:[#allocation0]]
  $region57: #{tpu_custom_call.1} parent=0
    _
  %s5 = ssub.s32 1, %s3
  %s6 = scalar_select 0, %s5, %s3
  $region1: #{tpu_custom_call.1} parent=0
    #allocation5 [shape = 'u8[65536]{0}', space=vmem, size = 0x10000, scoped, tag = 'input window, operand 0']
    #allocation6 [shape = 's32[2]{0}', space=sflag, size = 0x8, scoped, tag = 'scoped memory for tpu_custom_call.1']
    #allocation7 [shape = 's32[2]{0}', space=sflag, size = 0x8, scoped, tag = 'scoped memory for tpu_custom_call.1']
    #allocation8 [shape = 'u8[262144]{0}', space=vmem, size = 0x40000, scoped, tag = 'input window, operand 1']
    #allocation9 [shape = 's32[2]{0}', space=sflag, size = 0x8, scoped, tag = 'scoped memory for tpu_custom_call.1']
    #allocation10 [shape = 'u8[8192]{0}', space=vmem, size = 0x2000, scoped, tag = 'output window, operand 0']
    %7 = vsyncpa [#allocation6], 0
    %s8 = scalar_lea.sflag [#allocation6], 1
    %9 = vsyncpa %s8, 0
    %10 = vsyncpa [#allocation9], 0
    %s11 = scalar_lea.sflag [#allocation9], 1
    %12 = vsyncpa %s11, 0
    %13 = vsyncpa [#allocation7], 0
    %s14 = scalar_lea.sflag [#allocation7], 1
    %15 = vsyncpa %s14, 0
    loop: start=0, step=1, limit=4
    $region2: #{tpu_custom_call.1} parent=1 // loop_pre_header
      _
    $region3: #{tpu_custom_call.1} parent=1 // loop_header
      %s17 = sphi 0, %s21
      %p18 = scmp.ge.s32.totalorder %s17, 4
      %s24 = sphi 0, %s43
      %s25 = sphi 0, %s39
      %s26 = sphi 0, %s35
      %s27 = sphi 0, %s24
      %s28 = sphi 0, %s25
      %s29 = sphi 0, %s26
      %s30 = sphi 0, %s27
      %s31 = sphi 0, %s28
      %s32 = sphi 0, %s29
      %s48 = sphi 0, %s50
      %s51 = sphi 0, %s48
      %s52 = sphi 0, %s51
      %s68 = sphi 0, %s52
      %s78 = sphi 0, %s80
      %s81 = sphi 0, %s78
      %s82 = sphi 0, %s81
      %s98 = sphi 0, %s82
      %s106 = sphi 0, %s108
      %s109 = sphi 0, %s106
      %s110 = sphi 0, %s109
      %s126 = sphi 0, %s110
    $region4: #{tpu_custom_call.1} parent=1 // loop_header_branch
      %20 = sbr.rel (%p18) target = $region8
    $region5: #{tpu_custom_call.1} parent=1 // loop_body
      %s22 = ssub.s32 %s17, 1
      %s23 = ssub.s32 %s17, 2
      %s33 = sadd.s32 1, %s26
      %p34 = scmp.ge.s32.totalorder %s33, 1
      %s35 = scalar_select %p34, 0, %s33
      %s36 = sadd.s32 1, %s25
      %s37 = scalar_select %p34, %s36, %s25
      %p38 = scmp.ge.s32.totalorder %s37, 1
      %s39 = scalar_select %p38, 0, %s37
      %s40 = sadd.s32 1, %s24
      %s41 = scalar_select %p38, %s40, %s24
      %p42 = scmp.ge.s32.totalorder %s41, 2
      %s43 = scalar_select %p42, 0, %s41
      %s44 = ssub.s32 %s24, %s43
      %s45 = ssub.s32 %s26, %s35
      %s46 = sor.u32 %s44, %s45
      %p47 = scmp.eq.s32.totalorder %s46, 0
      %s49 = sadd.s32 %s48, 1
      %s50 = scalar_select %p47, %s48, %s49
      %p53 = pneg %p47
      %p54 = scmp.eq.s32.totalorder %s17, 1
      %p55 = por %p53, %p54
      %p56 = scmp.ne.s32.totalorder %s48, %s51
      %p57 = scmp.eq.s32.totalorder %s17, 0
      %p58 = por %p56, %p57
      %p59 = scmp.ne.s32.totalorder %s48, %s51
      %p60 = scmp.eq.s32.totalorder %s22, 1
      %p61 = por %p59, %p60
      %p62 = scmp.ne.s32.totalorder %s51, %s52
      %p63 = scmp.eq.s32.totalorder %s22, 0
      %p64 = por %p62, %p63
      %p65 = scmp.ne.s32.totalorder %s51, %s52
      %p66 = scmp.eq.s32.totalorder %s23, 1
      %p67 = por %p65, %p66
      %p69 = scmp.ne.s32.totalorder %s52, %s68
      %p70 = scmp.eq.s32.totalorder %s23, 0
      %p71 = por %p69, %p70
      %s72 = ssub.s32 %s24, %s43
      %s73 = ssub.s32 %s25, %s39
      %s74 = sor.u32 %s72, %s73
      %s75 = ssub.s32 %s26, %s35
      %s76 = sor.u32 %s74, %s75
      %p77 = scmp.eq.s32.totalorder %s76, 0
      %s79 = sadd.s32 %s78, 1
      %s80 = scalar_select %p77, %s78, %s79
      %p83 = pneg %p77
      %p84 = scmp.eq.s32.totalorder %s17, 1
      %p85 = por %p83, %p84
      %p86 = scmp.ne.s32.totalorder %s78, %s81
      %p87 = scmp.eq.s32.totalorder %s17, 0
      %p88 = por %p86, %p87
      %p89 = scmp.ne.s32.totalorder %s78, %s81
      %p90 = scmp.eq.s32.totalorder %s22, 1
      %p91 = por %p89, %p90
      %p92 = scmp.ne.s32.totalorder %s81, %s82
      %p93 = scmp.eq.s32.totalorder %s22, 0
      %p94 = por %p92, %p93
      %p95 = scmp.ne.s32.totalorder %s81, %s82
      %p96 = scmp.eq.s32.totalorder %s23, 1
      %p97 = por %p95, %p96
      %p99 = scmp.ne.s32.totalorder %s82, %s98
      %p100 = scmp.eq.s32.totalorder %s23, 0
      %p101 = por %p99, %p100
      %s102 = ssub.s32 %s24, %s43
      %s103 = ssub.s32 %s25, %s39
      %s104 = sor.u32 %s102, %s103
      %p105 = scmp.eq.s32.totalorder %s104, 0
      %s107 = sadd.s32 %s106, 1
      %s108 = scalar_select %p105, %s106, %s107
      %p111 = pneg %p105
      %p112 = scmp.eq.s32.totalorder %s17, 1
      %p113 = por %p111, %p112
      %p114 = scmp.ne.s32.totalorder %s106, %s109
      %p115 = scmp.eq.s32.totalorder %s17, 0
      %p116 = por %p114, %p115
      %p117 = scmp.ne.s32.totalorder %s106, %s109
      %p118 = scmp.eq.s32.totalorder %s22, 1
      %p119 = por %p117, %p118
      %p120 = scmp.ne.s32.totalorder %s109, %s110
      %p121 = scmp.eq.s32.totalorder %s22, 0
      %p122 = por %p120, %p121
      %p123 = scmp.ne.s32.totalorder %s109, %s110
      %p124 = scmp.eq.s32.totalorder %s23, 1
      %p125 = por %p123, %p124
      %p127 = scmp.ne.s32.totalorder %s110, %s126
      %p128 = scmp.eq.s32.totalorder %s23, 0
      %p129 = por %p127, %p128
      %p130 = scmp.le.s32.totalorder 1, %s17
      %p131 = scmp.lt.s32.totalorder %s17, 3
      %p132 = pnand %p130, %p131
      %p133 = pneg %p132
      // Predicated region
      $region9: #{tpu_custom_call.1} parent=5 // pred_check
        _
      $region10: #{tpu_custom_call.1} parent=5 // pred_check_branch
        %135 = sbr.rel (%p132) target = $region12
      $region11: #{tpu_custom_call.1} parent=5 // pred_region
        %s136 = ssub.s32 %s17, 1
      $region12: #{tpu_custom_call.1} parent=5 // pred_fallthru
        _
      %p137 = scmp.lt.s32.totalorder %s17, 2
      // Predicated region
      $region13: #{tpu_custom_call.1} parent=5 // pred_check
        %p138 = pneg %p137
      $region14: #{tpu_custom_call.1} parent=5 // pred_check_branch
        %140 = sbr.rel (%p138) target = $region16
      $region15: #{tpu_custom_call.1} parent=5 // pred_region
        // Predicated region
        $region17: #{tpu_custom_call.1} parent=15 // pred_check
          %p141 = pneg %p58
        $region18: #{tpu_custom_call.1} parent=15 // pred_check_branch
          %143 = sbr.rel (%p141) target = $region20
        $region19: #{tpu_custom_call.1} parent=15 // pred_region
          %s144 = sand.u32 %s48, 1
          %s145 = scalar_lea.sflag [#allocation6], %s144
          %s146 = sand.u32 %s48, 1
          %s147 = smul.addr %s146, 64
          %s148 = scalar_lea.vmem [#allocation5], %s147
          %s149 = smul.u32 8, %s26
          %s151 = ssub.s32 1024, 1024
          %152 = vsyncadd %s145, %s151
          %s153 = smul.addr %s24, 8
          %s154 = sadd.s32 %s149, %s153
          %s155 = smul.addr %s154, 128
          %s156 = scalar_lea.hbm %s0, %s155
          %s158 = sshll.u32 %s148, 4
          %s159 = int_to_ptr.vmem [resolvable:$true] %s158
          %161 = dma.hbm_to_vmem [thread:$0]  %s156, 1024, %s159, %s145
        $region20: #{tpu_custom_call.1} parent=15 // pred_fallthru
          _
        // Predicated region
        $region21: #{tpu_custom_call.1} parent=15 // pred_check
          %p162 = pneg %p88
        $region22: #{tpu_custom_call.1} parent=15 // pred_check_branch
          %164 = sbr.rel (%p162) target = $region24
        $region23: #{tpu_custom_call.1} parent=15 // pred_region
          %s165 = sand.u32 %s78, 1
          %s166 = scalar_lea.sflag [#allocation9], %s165
          %s167 = sand.u32 %s78, 1
          %s168 = smul.addr %s167, 256
          %s169 = scalar_lea.vmem [#allocation8], %s168
          %s170 = smul.u32 4, %s25
          %s171 = smul.u32 8, %s26
          %s173 = ssub.s32 4096, 4096
          %174 = vsyncadd %s166, %s173
          %s175 = smul.addr %s170, 8
          %s176 = sadd.s32 %s171, %s175
          %s177 = smul.addr %s24, 32
          %s178 = sadd.s32 %s176, %s177
          %s179 = smul.addr %s178, 128
          %s180 = scalar_lea.hbm %s1, %s179
          %s181 = sshll.u32 %s169, 4
          %s182 = int_to_ptr.vmem [resolvable:$true] %s181
          %187 = dma.hbm_to_vmem [thread:$0]  %s180, 4096, %s182, %s166, 1024, 1024, 64
        $region24: #{tpu_custom_call.1} parent=15 // pred_fallthru
          _
      $region16: #{tpu_custom_call.1} parent=5 // pred_fallthru
        _
      %p188 = scmp.le.s32.totalorder 1, %s17
      %p189 = scmp.lt.s32.totalorder %s17, 3
      %p190 = pnand %p188, %p189
      %p191 = pneg %p190
      // Predicated region
      $region25: #{tpu_custom_call.1} parent=5 // pred_check
        _
      $region26: #{tpu_custom_call.1} parent=5 // pred_check_branch
        %193 = sbr.rel (%p190) target = $region28
      $region27: #{tpu_custom_call.1} parent=5 // pred_region
        %s194 = ssub.s32 %s17, 1
        %s195 = sand.u32 %s51, 1
        %s196 = scalar_lea.sflag [#allocation6], %s195
        %s197 = sand.u32 %s51, 1
        %s198 = smul.addr %s197, 64
        %s199 = scalar_lea.vmem [#allocation5], %s198
        // Predicated region
        $region29: #{tpu_custom_call.1} parent=27 // pred_check
          %p200 = pneg %p64
        $region30: #{tpu_custom_call.1} parent=27 // pred_check_branch
          %202 = sbr.rel (%p200) target = $region32
        $region31: #{tpu_custom_call.1} parent=27 // pred_region
          %203 = dma.done %s196, 1024
        $region32: #{tpu_custom_call.1} parent=27 // pred_fallthru
          _
        %s204 = sand.u32 %s81, 1
        %s205 = scalar_lea.sflag [#allocation9], %s204
        %s206 = sand.u32 %s81, 1
        %s207 = smul.addr %s206, 256
        %s208 = scalar_lea.vmem [#allocation8], %s207
        // Predicated region
        $region33: #{tpu_custom_call.1} parent=27 // pred_check
          %p209 = pneg %p94
        $region34: #{tpu_custom_call.1} parent=27 // pred_check_branch
          %211 = sbr.rel (%p209) target = $region36
        $region35: #{tpu_custom_call.1} parent=27 // pred_region
          %212 = dma.done %s205, 4096
        $region36: #{tpu_custom_call.1} parent=27 // pred_fallthru
          _
        %s213 = sand.u32 %s51, 1
        %s214 = scalar_lea.sflag [#allocation6], %s213
        %s215 = sand.u32 %s51, 1
        %s216 = smul.addr %s215, 64
        %s217 = scalar_lea.vmem [#allocation5], %s216
        %p218 = pneg %p64
        %p219 = pneg %p61
        %s220 = sand.u32 %s81, 1
        %s221 = scalar_lea.sflag [#allocation9], %s220
        %s222 = sand.u32 %s81, 1
        %s223 = smul.addr %s222, 256
        %s224 = scalar_lea.vmem [#allocation8], %s223
        %p225 = pneg %p94
        %p226 = pneg %p91
        %p227 = pneg %p122
        %p228 = pneg %p119
        %s229 = sand.u32 %s109, 1
        %s230 = scalar_lea.sflag [#allocation7], %s229
        %s231 = sand.u32 %s109, 1
        %s232 = smul.addr %s231, 8
        %s233 = scalar_lea.vmem [#allocation10], %s232
        %s234 = smul.u32 8, %s29
        %s235 = smul.u32 4, %s28
        %s236 = smul.u32 8, %s29
        %p237 = scmp.eq.s32.totalorder %s29, 0
        // Predicated region
        $region37: #{tpu_custom_call.1} parent=27 // pred_check
          %p238 = pneg %p237
        $region38: #{tpu_custom_call.1} parent=27 // pred_check_branch
          %240 = sbr.rel (%p238) target = $region40
        $region39: #{tpu_custom_call.1} parent=27 // pred_region
          %vm241 = vcmask 261120
          %242 = vst.msk [vmem:[#allocation2] sm:$0xff] %vm241, 0.0
          %vm243 = vcmask 7168
          %244 = vst.msk [vmem:[#allocation3] sm:$0xff] %vm243, -inf
          %245 = vst.msk [vmem:[#allocation4] sm:$0xff] %vm243, 0.0
        $region40: #{tpu_custom_call.1} parent=27 // pred_fallthru
          _
        %v246 = vld [vmem:[%s199] sm:$0xff]
        %v247 = vld [vmem:[%s199 + $0x8] sm:$0xff]
        %v248 = vld [vmem:[%s199 + $0x10] sm:$0xff]
        %v249 = vld [vmem:[%s199 + $0x18] sm:$0xff]
        %v250 = vld [vmem:[%s199 + $0x20] sm:$0xff]
        %v251 = vld [vmem:[%s199 + $0x28] sm:$0xff]
        %v252 = vld [vmem:[%s199 + $0x30] sm:$0xff]
        %v253 = vld [vmem:[%s199 + $0x38] sm:$0xff]
        %v254 = vmul.f32 %v246, 2.0
        %v255 = vmul.f32 %v247, 2.0
        %v256 = vmul.f32 %v248, 2.0
        %v257 = vmul.f32 %v249, 2.0
        %v258 = vmul.f32 %v250, 2.0
        %v259 = vmul.f32 %v251, 2.0
        %v260 = vmul.f32 %v252, 2.0
        %v261 = vmul.f32 %v253, 2.0
        %v262 = vld [vmem:[#allocation3] sm:$0xff]
        %v263 = vmax.f32 %v254, %v258
        %v264 = vmax.f32 %v255, %v259
        %v265 = vmax.f32 %v256, %v260
        %v266 = vmax.f32 %v257, %v261
        %v267 = vmax.f32 %v263, %v264
        %v268 = vmax.f32 %v265, %v266
        %v269 = vmax.f32 %v267, %v268
        %270 = vmax.xlane.f32.xlu0 %v269
        %v271 = vpop.xlane.xlu0 %270
        %v272 = vmax.f32 %v262, %v271
        %v273 = vsub.f32 %v262, %v272
        %v274 = vmul.f32 %v273, 1.442695
        %v275 = vpow.pop %v274
        %277 = vset.pattern.permute.xlu0 0
        %278 = vperm.xlu0 %277, %v272
        %v279 = vpop.permute.xlu0 %278
        %v281 = vsub.f32 %v254, %v279
        %v282 = vsub.f32 %v255, %v279
        %v283 = vsub.f32 %v256, %v279
        %v284 = vsub.f32 %v257, %v279
        %v285 = vsub.f32 %v258, %v279
        %v286 = vsub.f32 %v259, %v279
        %v287 = vsub.f32 %v260, %v279
        %v288 = vsub.f32 %v261, %v279
        %v289 = vmul.f32 %v281, 1.442695
        %v290 = vpow.pop %v289
        %v291 = vmul.f32 %v282, 1.442695
        %v292 = vpow.pop %v291
        %v293 = vmul.f32 %v283, 1.442695
        %v294 = vpow.pop %v293
        %v295 = vmul.f32 %v284, 1.442695
        %v296 = vpow.pop %v295
        %v297 = vmul.f32 %v285, 1.442695
        %v298 = vpow.pop %v297
        %v299 = vmul.f32 %v286, 1.442695
        %v300 = vpow.pop %v299
        %v301 = vmul.f32 %v287, 1.442695
        %v302 = vpow.pop %v301
        %v303 = vmul.f32 %v288, 1.442695
        %v304 = vpow.pop %v303
        %vm305 = vcmask 7168
        %306 = vst.msk [vmem:[#allocation3] sm:$0xff] %vm305, %v272
        %v307 = vld [vmem:[#allocation4] sm:$0xff]
        %v308 = vmul.f32 %v275, %v307
        %v309 = vadd.f32 %v290, %v292
        %v310 = vadd.f32 %v309, %v294
        %v311 = vadd.f32 %v310, %v296
        %v312 = vadd.f32 %v311, %v298
        %v313 = vadd.f32 %v312, %v300
        %v314 = vadd.f32 %v313, %v302
        %v315 = vadd.f32 %v314, %v304
        %316 = vadd.xlane.f32.xlu0 %v315
        %v317 = vpop.xlane.xlu0 %316
        %v318 = vadd.f32 %v308, %v317
        %319 = vst.msk [vmem:[#allocation4] sm:$0xff] %vm305, %v318
        %v320 = vld [vmem:[%s208] sm:$0xff]
        %v321 = vld [vmem:[%s208 + $0x8] sm:$0xff]
        %v322 = vld [vmem:[%s208 + $0x10] sm:$0xff]
        %v323 = vld [vmem:[%s208 + $0x18] sm:$0xff]
        %v324 = vld [vmem:[%s208 + $0x20] sm:$0xff]
        %v325 = vld [vmem:[%s208 + $0x28] sm:$0xff]
        %v326 = vld [vmem:[%s208 + $0x30] sm:$0xff]
        %v327 = vld [vmem:[%s208 + $0x38] sm:$0xff]
        %v328 = vld [vmem:[%s208 + $0x40] sm:$0xff]
        %v329 = vld [vmem:[%s208 + $0x48] sm:$0xff]
        %v330 = vld [vmem:[%s208 + $0x50] sm:$0xff]
        %v331 = vld [vmem:[%s208 + $0x58] sm:$0xff]
        %v332 = vld [vmem:[%s208 + $0x60] sm:$0xff]
        %v333 = vld [vmem:[%s208 + $0x68] sm:$0xff]
        %v334 = vld [vmem:[%s208 + $0x70] sm:$0xff]
        %v335 = vld [vmem:[%s208 + $0x78] sm:$0xff]
        %v336 = vld [vmem:[%s208 + $0x80] sm:$0xff]
        %v337 = vld [vmem:[%s208 + $0x88] sm:$0xff]
        %v338 = vld [vmem:[%s208 + $0x90] sm:$0xff]
        %v339 = vld [vmem:[%s208 + $0x98] sm:$0xff]
        %v340 = vld [vmem:[%s208 + $0xa0] sm:$0xff]
        %v341 = vld [vmem:[%s208 + $0xa8] sm:$0xff]
        %v342 = vld [vmem:[%s208 + $0xb0] sm:$0xff]
        %v343 = vld [vmem:[%s208 + $0xb8] sm:$0xff]
        %v344 = vld [vmem:[%s208 + $0xc0] sm:$0xff]
        %v345 = vld [vmem:[%s208 + $0xc8] sm:$0xff]
        %v346 = vld [vmem:[%s208 + $0xd0] sm:$0xff]
        %v347 = vld [vmem:[%s208 + $0xd8] sm:$0xff]
        %v348 = vld [vmem:[%s208 + $0xe0] sm:$0xff]
        %v349 = vld [vmem:[%s208 + $0xe8] sm:$0xff]
        %v350 = vld [vmem:[%s208 + $0xf0] sm:$0xff]
        %v351 = vld [vmem:[%s208 + $0xf8] sm:$0xff]
        %352 = vmatprep.subr.mxu0 0.0
        %353 = vmatpush1.xpose.msra.mxu0 0.0
        %354 = vmatprep.subr.mxu0 0.0
        %355 = vmatpush1.xpose.msra.mxu0 0.0
        %356 = vmatprep.subr.mxu0 0.0
        %357 = vmatpush1.xpose.msra.mxu0 0.0
        %358 = vmatprep.subr.mxu0 0.0
        %359 = vmatpush1.xpose.msra.mxu0 0.0
        %360 = vmatprep.subr.mxu0 0.0
        %361 = vmatpush1.xpose.msra.mxu0 0.0
        %362 = vmatprep.subr.mxu0 0.0
        %363 = vmatpush1.xpose.msra.mxu0 0.0
        %364 = vmatprep.subr.mxu0 0.0
        %365 = vmatpush1.xpose.msra.mxu0 0.0
        %366 = vmatprep.subr.mxu0 0.0
        %367 = vmatpush1.xpose.msra.mxu0 0.0
        %368 = vmatprep.subr.mxu0 0.0
        %369 = vmatpush1.xpose.msra.mxu0 0.0
        %370 = vmatprep.subr.mxu0 0.0
        %371 = vmatpush1.xpose.msra.mxu0 0.0
        %372 = vmatprep.subr.mxu0 0.0
        %373 = vmatpush1.xpose.msra.mxu0 0.0
        %374 = vmatprep.subr.mxu0 0.0
        %375 = vmatpush1.xpose.msra.mxu0 0.0
        %376 = vmatprep.subr.mxu0 %v345
        %377 = vmatpush1.xpose.msra.mxu0 %v344
        %378 = vmatprep.subr.mxu0 %v337
        %379 = vmatpush1.xpose.msra.mxu0 %v336
        %380 = vmatprep.subr.mxu0 %v329
        %381 = vmatpush1.xpose.msra.mxu0 %v328
        %382 = vmatprep.subr.mxu0 %v321
        %383 = vmatpush1.xpose.msra.mxu0 %v320
        %384 = vmatprep.subr.mxu0 0.0
        %385 = vmatpush2.xpose.msra.mxu0 0.0
        %386 = vmatprep.subr.mxu0 0.0
        %387 = vmatpush2.xpose.msra.mxu0 0.0
        %388 = vmatprep.subr.mxu0 0.0
        %389 = vmatpush2.xpose.msra.mxu0 0.0
        %390 = vmatprep.subr.mxu0 0.0
        %391 = vmatpush2.xpose.msra.mxu0 0.0
        %392 = vmatprep.subr.mxu0 0.0
        %393 = vmatpush2.xpose.msra.mxu0 0.0
        %394 = vmatprep.subr.mxu0 0.0
        %395 = vmatpush2.xpose.msra.mxu0 0.0
        %396 = vmatprep.subr.mxu0 0.0
        %397 = vmatpush2.xpose.msra.mxu0 0.0
        %398 = vmatprep.subr.mxu0 0.0
        %399 = vmatpush2.xpose.msra.mxu0 0.0
        %400 = vmatprep.subr.mxu0 0.0
        %401 = vmatpush2.xpose.msra.mxu0 0.0
        %402 = vmatprep.subr.mxu0 0.0
        %403 = vmatpush2.xpose.msra.mxu0 0.0
        %404 = vmatprep.subr.mxu0 0.0
        %405 = vmatpush2.xpose.msra.mxu0 0.0
        %406 = vmatprep.subr.mxu0 0.0
        %407 = vmatpush2.xpose.msra.mxu0 0.0
        %408 = vmatprep.subr.mxu0 0.0
        %409 = vmatpush2.xpose.msra.mxu0 0.0
        %410 = vmatprep.subr.mxu0 0.0
        %411 = vmatpush2.xpose.msra.mxu0 0.0
        %412 = vmatprep.subr.mxu0 0.0
        %413 = vmatpush2.xpose.msra.mxu0 0.0
        %414 = vmatprep.subr.mxu0 0.0
        %415 = vmatpush2.xpose.msra.mxu0 0.0
        %416 = vmatprep.mubr.f32.mxu0 %v292
        %417 = vmatmul.mubr.f32.gmra.mxu0 %v290
        %v418 = vpop.f32.mrf.mxu0
        %v419 = vadd.f32 0.0, %v418
        %v420 = vpop.f32.mrf.mxu0
        %421 = vdwg.mxu0
        %422 = vmatprep.subr.mxu0 0.0
        %423 = vmatpush1.xpose.msra.mxu0 0.0
        %424 = vmatprep.subr.mxu0 0.0
        %425 = vmatpush1.xpose.msra.mxu0 0.0
        %426 = vmatprep.subr.mxu0 0.0
        %427 = vmatpush1.xpose.msra.mxu0 0.0
        %428 = vmatprep.subr.mxu0 0.0
        %429 = vmatpush1.xpose.msra.mxu0 0.0
        %430 = vmatprep.subr.mxu0 0.0
        %431 = vmatpush1.xpose.msra.mxu0 0.0
        %432 = vmatprep.subr.mxu0 0.0
        %433 = vmatpush1.xpose.msra.mxu0 0.0
        %434 = vmatprep.subr.mxu0 0.0
        %435 = vmatpush1.xpose.msra.mxu0 0.0
        %436 = vmatprep.subr.mxu0 0.0
        %437 = vmatpush1.xpose.msra.mxu0 0.0
        %438 = vmatprep.subr.mxu0 0.0
        %439 = vmatpush1.xpose.msra.mxu0 0.0
        %440 = vmatprep.subr.mxu0 0.0
        %441 = vmatpush1.xpose.msra.mxu0 0.0
        %442 = vmatprep.subr.mxu0 0.0
        %443 = vmatpush1.xpose.msra.mxu0 0.0
        %444 = vmatprep.subr.mxu0 0.0
        %445 = vmatpush1.xpose.msra.mxu0 0.0
        %446 = vmatprep.subr.mxu0 %v347
        %447 = vmatpush1.xpose.msra.mxu0 %v346
        %448 = vmatprep.subr.mxu0 %v339
        %449 = vmatpush1.xpose.msra.mxu0 %v338
        %450 = vmatprep.subr.mxu0 %v331
        %451 = vmatpush1.xpose.msra.mxu0 %v330
        %452 = vmatprep.subr.mxu0 %v323
        %453 = vmatpush1.xpose.msra.mxu0 %v322
        %454 = vmatprep.subr.mxu0 0.0
        %455 = vmatpush2.xpose.msra.mxu0 0.0
        %456 = vmatprep.subr.mxu0 0.0
        %457 = vmatpush2.xpose.msra.mxu0 0.0
        %458 = vmatprep.subr.mxu0 0.0
        %459 = vmatpush2.xpose.msra.mxu0 0.0
        %460 = vmatprep.subr.mxu0 0.0
        %461 = vmatpush2.xpose.msra.mxu0 0.0
        %462 = vmatprep.subr.mxu0 0.0
        %463 = vmatpush2.xpose.msra.mxu0 0.0
        %464 = vmatprep.subr.mxu0 0.0
        %465 = vmatpush2.xpose.msra.mxu0 0.0
        %466 = vmatprep.subr.mxu0 0.0
        %467 = vmatpush2.xpose.msra.mxu0 0.0
        %468 = vmatprep.subr.mxu0 0.0
        %469 = vmatpush2.xpose.msra.mxu0 0.0
        %470 = vmatprep.subr.mxu0 0.0
        %471 = vmatpush2.xpose.msra.mxu0 0.0
        %472 = vmatprep.subr.mxu0 0.0
        %473 = vmatpush2.xpose.msra.mxu0 0.0
        %474 = vmatprep.subr.mxu0 0.0
        %475 = vmatpush2.xpose.msra.mxu0 0.0
        %476 = vmatprep.subr.mxu0 0.0
        %477 = vmatpush2.xpose.msra.mxu0 0.0
        %478 = vmatprep.subr.mxu0 0.0
        %479 = vmatpush2.xpose.msra.mxu0 0.0
        %480 = vmatprep.subr.mxu0 0.0
        %481 = vmatpush2.xpose.msra.mxu0 0.0
        %482 = vmatprep.subr.mxu0 0.0
        %483 = vmatpush2.xpose.msra.mxu0 0.0
        %484 = vmatprep.subr.mxu0 0.0
        %485 = vmatpush2.xpose.msra.mxu0 0.0
        %486 = vmatprep.mubr.f32.mxu0 %v296
        %487 = vmatmul.mubr.f32.gmra.mxu0 %v294
        %v488 = vpop.f32.mrf.mxu0
        %v489 = vadd.f32 %v419, %v488
        %v490 = vpop.f32.mrf.mxu0
        %491 = vdwg.mxu0
        %492 = vmatprep.subr.mxu0 0.0
        %493 = vmatpush1.xpose.msra.mxu0 0.0
        %494 = vmatprep.subr.mxu0 0.0
        %495 = vmatpush1.xpose.msra.mxu0 0.0
        %496 = vmatprep.subr.mxu0 0.0
        %497 = vmatpush1.xpose.msra.mxu0 0.0
        %498 = vmatprep.subr.mxu0 0.0
        %499 = vmatpush1.xpose.msra.mxu0 0.0
        %500 = vmatprep.subr.mxu0 0.0
        %501 = vmatpush1.xpose.msra.mxu0 0.0
        %502 = vmatprep.subr.mxu0 0.0
        %503 = vmatpush1.xpose.msra.mxu0 0.0
        %504 = vmatprep.subr.mxu0 0.0
        %505 = vmatpush1.xpose.msra.mxu0 0.0
        %506 = vmatprep.subr.mxu0 0.0
        %507 = vmatpush1.xpose.msra.mxu0 0.0
        %508 = vmatprep.subr.mxu0 0.0
        %509 = vmatpush1.xpose.msra.mxu0 0.0
        %510 = vmatprep.subr.mxu0 0.0
        %511 = vmatpush1.xpose.msra.mxu0 0.0
        %512 = vmatprep.subr.mxu0 0.0
        %513 = vmatpush1.xpose.msra.mxu0 0.0
        %514 = vmatprep.subr.mxu0 0.0
        %515 = vmatpush1.xpose.msra.mxu0 0.0
        %516 = vmatprep.subr.mxu0 %v349
        %517 = vmatpush1.xpose.msra.mxu0 %v348
        %518 = vmatprep.subr.mxu0 %v341
        %519 = vmatpush1.xpose.msra.mxu0 %v340
        %520 = vmatprep.subr.mxu0 %v333
        %521 = vmatpush1.xpose.msra.mxu0 %v332
        %522 = vmatprep.subr.mxu0 %v325
        %523 = vmatpush1.xpose.msra.mxu0 %v324
        %524 = vmatprep.subr.mxu0 0.0
        %525 = vmatpush2.xpose.msra.mxu0 0.0
        %526 = vmatprep.subr.mxu0 0.0
        %527 = vmatpush2.xpose.msra.mxu0 0.0
        %528 = vmatprep.subr.mxu0 0.0
        %529 = vmatpush2.xpose.msra.mxu0 0.0
        %530 = vmatprep.subr.mxu0 0.0
        %531 = vmatpush2.xpose.msra.mxu0 0.0
        %532 = vmatprep.subr.mxu0 0.0
        %533 = vmatpush2.xpose.msra.mxu0 0.0
        %534 = vmatprep.subr.mxu0 0.0
        %535 = vmatpush2.xpose.msra.mxu0 0.0
        %536 = vmatprep.subr.mxu0 0.0
        %537 = vmatpush2.xpose.msra.mxu0 0.0
        %538 = vmatprep.subr.mxu0 0.0
        %539 = vmatpush2.xpose.msra.mxu0 0.0
        %540 = vmatprep.subr.mxu0 0.0
        %541 = vmatpush2.xpose.msra.mxu0 0.0
        %542 = vmatprep.subr.mxu0 0.0
        %543 = vmatpush2.xpose.msra.mxu0 0.0
        %544 = vmatprep.subr.mxu0 0.0
        %545 = vmatpush2.xpose.msra.mxu0 0.0
        %546 = vmatprep.subr.mxu0 0.0
        %547 = vmatpush2.xpose.msra.mxu0 0.0
        %548 = vmatprep.subr.mxu0 0.0
        %549 = vmatpush2.xpose.msra.mxu0 0.0
        %550 = vmatprep.subr.mxu0 0.0
        %551 = vmatpush2.xpose.msra.mxu0 0.0
        %552 = vmatprep.subr.mxu0 0.0
        %553 = vmatpush2.xpose.msra.mxu0 0.0
        %554 = vmatprep.subr.mxu0 0.0
        %555 = vmatpush2.xpose.msra.mxu0 0.0
        %556 = vmatprep.mubr.f32.mxu0 %v300
        %557 = vmatmul.mubr.f32.gmra.mxu0 %v298
        %v558 = vpop.f32.mrf.mxu0
        %v559 = vadd.f32 %v489, %v558
        %v560 = vpop.f32.mrf.mxu0
        %561 = vdwg.mxu0
        %562 = vmatprep.subr.mxu0 0.0
        %563 = vmatpush1.xpose.msra.mxu0 0.0
        %564 = vmatprep.subr.mxu0 0.0
        %565 = vmatpush1.xpose.msra.mxu0 0.0
        %566 = vmatprep.subr.mxu0 0.0
        %567 = vmatpush1.xpose.msra.mxu0 0.0
        %568 = vmatprep.subr.mxu0 0.0
        %569 = vmatpush1.xpose.msra.mxu0 0.0
        %570 = vmatprep.subr.mxu0 0.0
        %571 = vmatpush1.xpose.msra.mxu0 0.0
        %572 = vmatprep.subr.mxu0 0.0
        %573 = vmatpush1.xpose.msra.mxu0 0.0
        %574 = vmatprep.subr.mxu0 0.0
        %575 = vmatpush1.xpose.msra.mxu0 0.0
        %576 = vmatprep.subr.mxu0 0.0
        %577 = vmatpush1.xpose.msra.mxu0 0.0
        %578 = vmatprep.subr.mxu0 0.0
        %579 = vmatpush1.xpose.msra.mxu0 0.0
        %580 = vmatprep.subr.mxu0 0.0
        %581 = vmatpush1.xpose.msra.mxu0 0.0
        %582 = vmatprep.subr.mxu0 0.0
        %583 = vmatpush1.xpose.msra.mxu0 0.0
        %584 = vmatprep.subr.mxu0 0.0
        %585 = vmatpush1.xpose.msra.mxu0 0.0
        %586 = vmatprep.subr.mxu0 %v351
        %587 = vmatpush1.xpose.msra.mxu0 %v350
        %588 = vmatprep.subr.mxu0 %v343
        %589 = vmatpush1.xpose.msra.mxu0 %v342
        %590 = vmatprep.subr.mxu0 %v335
        %591 = vmatpush1.xpose.msra.mxu0 %v334
        %592 = vmatprep.subr.mxu0 %v327
        %593 = vmatpush1.xpose.msra.mxu0 %v326
        %594 = vmatprep.subr.mxu0 0.0
        %595 = vmatpush2.xpose.msra.mxu0 0.0
        %596 = vmatprep.subr.mxu0 0.0
        %597 = vmatpush2.xpose.msra.mxu0 0.0
        %598 = vmatprep.subr.mxu0 0.0
        %599 = vmatpush2.xpose.msra.mxu0 0.0
        %600 = vmatprep.subr.mxu0 0.0
        %601 = vmatpush2.xpose.msra.mxu0 0.0
        %602 = vmatprep.subr.mxu0 0.0
        %603 = vmatpush2.xpose.msra.mxu0 0.0
        %604 = vmatprep.subr.mxu0 0.0
        %605 = vmatpush2.xpose.msra.mxu0 0.0
        %606 = vmatprep.subr.mxu0 0.0
        %607 = vmatpush2.xpose.msra.mxu0 0.0
        %608 = vmatprep.subr.mxu0 0.0
        %609 = vmatpush2.xpose.msra.mxu0 0.0
        %610 = vmatprep.subr.mxu0 0.0
        %611 = vmatpush2.xpose.msra.mxu0 0.0
        %612 = vmatprep.subr.mxu0 0.0
        %613 = vmatpush2.xpose.msra.mxu0 0.0
        %614 = vmatprep.subr.mxu0 0.0
        %615 = vmatpush2.xpose.msra.mxu0 0.0
        %616 = vmatprep.subr.mxu0 0.0
        %617 = vmatpush2.xpose.msra.mxu0 0.0
        %618 = vmatprep.subr.mxu0 0.0
        %619 = vmatpush2.xpose.msra.mxu0 0.0
        %620 = vmatprep.subr.mxu0 0.0
        %621 = vmatpush2.xpose.msra.mxu0 0.0
        %622 = vmatprep.subr.mxu0 0.0
        %623 = vmatpush2.xpose.msra.mxu0 0.0
        %624 = vmatprep.subr.mxu0 0.0
        %625 = vmatpush2.xpose.msra.mxu0 0.0
        %626 = vmatprep.mubr.f32.mxu0 %v304
        %627 = vmatmul.mubr.f32.gmra.mxu0 %v302
        %v628 = vpop.f32.mrf.mxu0
        %v629 = vadd.f32 %v559, %v628
        %v630 = vpop.f32.mrf.mxu0
        %631 = vdwg.mxu0
        %v632 = vld [vmem:[#allocation2] sm:$0xff]
        %634 = vset.pattern.permute.xlu0 0
        %635 = vperm.xlu0 %634, %v275
        %v636 = vpop.permute.xlu0 %635
        %v638 = vmul.f32 %v632, %v636
        %v639 = vadd.f32 %v638, %v629
        %vm640 = vcmask 261120
        %641 = vst.msk [vmem:[#allocation2] sm:$0xff] %vm640, %v639
        // Predicated region
        $region41: #{tpu_custom_call.1} parent=27 // pred_check
          %p642 = pneg %p237
        $region42: #{tpu_custom_call.1} parent=27 // pred_check_branch
          %644 = sbr.rel (%p642) target = $region44
        $region43: #{tpu_custom_call.1} parent=27 // pred_region
          %v645 = vld [vmem:[#allocation2] sm:$0xff]
          %v646 = vld [vmem:[#allocation4] sm:$0xff]
          %648 = vset.pattern.permute.xlu0 0
          %649 = vperm.xlu0 %648, %v646
          %v650 = vpop.permute.xlu0 %649
          %v652 = vrcp.pop %v650
          %v653 = vmul.f32 %v645, %v652
          %654 = vst.msk [vmem:[%s233] sm:$0xff] %vm640, %v653
        $region44: #{tpu_custom_call.1} parent=27 // pred_fallthru
          _
        %s655 = sand.u32 %s109, 1
        %s656 = scalar_lea.sflag [#allocation7], %s655
        %s657 = sand.u32 %s109, 1
        %s658 = smul.addr %s657, 8
        %s659 = scalar_lea.vmem [#allocation10], %s658
        // Predicated region
        $region45: #{tpu_custom_call.1} parent=27 // pred_check
          %p660 = pneg %p119
        $region46: #{tpu_custom_call.1} parent=27 // pred_check_branch
          %662 = sbr.rel (%p660) target = $region48
        $region47: #{tpu_custom_call.1} parent=27 // pred_region
          %s664 = ssub.s32 128, 128
          %665 = vsyncadd %s656, %s664
          %s666 = sadd.s32 %s28, %s27
          %s667 = smul.addr %s666, 128
          %s668 = scalar_lea.hbm %s2, %s667
          %s670 = sshll.u32 %s659, 4
          %s671 = int_to_ptr.vmem [resolvable:$true] %s670
          %673 = dma.vmem_to_hbm [thread:$0]  %s671, 128, %s668, %s656
        $region48: #{tpu_custom_call.1} parent=27 // pred_fallthru
          _
      $region28: #{tpu_custom_call.1} parent=5 // pred_fallthru
        _
      %p674 = scmp.le.s32.totalorder 2, %s17
      // Predicated region
      $region49: #{tpu_custom_call.1} parent=5 // pred_check
        %p675 = pneg %p674
      $region50: #{tpu_custom_call.1} parent=5 // pred_check_branch
        %677 = sbr.rel (%p675) target = $region52
      $region51: #{tpu_custom_call.1} parent=5 // pred_region
        %s678 = ssub.s32 %s17, 2
        // Predicated region
        $region53: #{tpu_custom_call.1} parent=51 // pred_check
          %p679 = pneg %p125
        $region54: #{tpu_custom_call.1} parent=51 // pred_check_branch
          %681 = sbr.rel (%p679) target = $region56
        $region55: #{tpu_custom_call.1} parent=51 // pred_region
          %s682 = sand.u32 %s110, 1
          %s683 = scalar_lea.sflag [#allocation7], %s682
          %s684 = sand.u32 %s110, 1
          %s685 = smul.addr %s684, 8
          %s686 = scalar_lea.vmem [#allocation10], %s685
          %687 = dma.done %s683, 128
        $region56: #{tpu_custom_call.1} parent=51 // pred_fallthru
          _
      $region52: #{tpu_custom_call.1} parent=5 // pred_fallthru
        _
    $region6: #{tpu_custom_call.1} parent=1 // loop_footer
      %s21 = sadd.s32 1, %s17
    $region7: #{tpu_custom_call.1} parent=1 // loop_footer_branch
      %16 = sbr.rel target = $region3
    $region8: #{tpu_custom_call.1} parent=1 // loop_exit
      _
    %688 = vsyncpa [#allocation6], 1
    %s689 = scalar_lea.sflag [#allocation6], 1
    %690 = vsyncpa %s689, 1
    %691 = vsyncpa [#allocation9], 1
    %s692 = scalar_lea.sflag [#allocation9], 1
    %693 = vsyncpa %s692, 1
    %694 = vsyncpa [#allocation7], 1
    %s695 = scalar_lea.sflag [#allocation7], 1
    %696 = vsyncpa %s695, 1

</llo_original>
